<compile_context>
chip_gen: v6e
topology: v6e:2x2x1
jax: 0.10.0
libtpu: 0.0.40
codegen_flags: <defaults>
</compile_context>

<pallas_src>
import functools

import jax
import jax.numpy as jnp
from jax.experimental import pallas as pl
from jax.experimental.pallas import tpu as pltpu


def _stft_mag_kernel(basis_ref, frames_ref, out_ref, *, nbins_pad):
    # basis_ref : (2*nbins_pad, k_pad)  [cos ; -sin], Hann window folded in,
    #                                   K trimmed to the window support.
    # frames_ref: (1, k_pad, tf)        one batch row, tf frames as lane columns.
    # out_ref   : (1, nbins_pad, tf)
    res = jnp.dot(basis_ref[...], frames_ref[0],
                  preferred_element_type=jnp.float32)          # (2*nbins_pad, tf)
    re = res[:nbins_pad, :]
    im = res[nbins_pad:, :]
    # Elementwise magnitude rides free on VPU/EUP once the kernel is MXU-bound.
    out_ref[0] = jnp.sqrt(re * re + im * im).astype(out_ref.dtype)


def _hann_window(window_len):
    # torch.hann_window(N) (periodic=True): 0.5 * (1 - cos(2*pi*n/N))
    n = jnp.arange(window_len, dtype=jnp.float32)
    return 0.5 * (1.0 - jnp.cos(2.0 * jnp.pi * n / window_len))


@functools.lru_cache(maxsize=8)
def _make_basis(nfft, window_len, nbins_pad, k_pad, left, dtype_name):
    """Fused window-folded DFT basis [cos ; -sin] over the window support only."""
    w = _hann_window(window_len)
    w_full = jnp.zeros((k_pad,), jnp.float32).at[:window_len].set(w)
    k = jnp.arange(nbins_pad, dtype=jnp.float32)[:, None]
    # Absolute sample index inside the nfft frame (window centred at `left`); the
    # per-frame phase offset cancels in the magnitude but this matches torch.stft.
    n = (left + jnp.arange(k_pad, dtype=jnp.float32))[None, :]
    ang = 2.0 * jnp.pi * k * n / nfft
    cos_b = w_full[None, :] * jnp.cos(ang)
    sin_b = -w_full[None, :] * jnp.sin(ang)
    return jnp.concatenate([cos_b, sin_b], axis=0).astype(jnp.dtype(dtype_name))


def _choose_tf(n_frames, batch):
    # Largest lane-dense frame tile (>= MXU height) whose zero-pad waste stays
    # under ~15% and which still leaves >= 4 grid steps (v7x megacore = 2 TCs).
    # v5e is already MXU-bound at 128/256; bigger tiles only add padding waste.
    for cand in (512, 256, 128):
        fpad = -(-n_frames // cand) * cand
        waste = (fpad - n_frames) / fpad
        steps = batch * (fpad // cand)
        if cand == 128 or (waste <= 0.15 and steps >= 4):
            return cand
    return 128


def stft_mag(x, nfft=2048, hop=300, window_len=1200, *,
             tf=None, compute_dtype=jnp.bfloat16, strip_padding=True):
    """x: (B, T) float32  ->  (B, nfft//2+1, 1 + T//hop) float32 (STFT magnitude).

    bf16 operands quantize the audio to ~3 significant digits; error is bounded
    relative to the peak magnitude (~2e-2 * max).  Pass compute_dtype=jnp.float32
    if downstream takes log-magnitudes of very low-energy bins.
    """
    x = x.astype(jnp.float32)
    B, T = x.shape
    pad = nfft // 2
    left = (nfft - window_len) // 2                 # torch centres the window in nfft
    nbins = nfft // 2 + 1
    nbins_pad = ((nbins + 7) // 8) * 8              # sublane-aligned re/im split
    k_pad = ((window_len + 127) // 128) * 128       # K trimmed to window support
    n_frames = 1 + T // hop
    if tf is None:
        tf = _choose_tf(n_frames, B)
    n_frames_pad = ((n_frames + tf - 1) // tf) * tf

    # --- glue: center/reflect padding + frame extraction, built directly in the
    #     transposed (B, k_pad, frames) layout the kernel wants.  Only the
    #     window_len-sample support of each nfft frame is extracted (K-trim).
    xp = jnp.pad(x, ((0, 0), (pad, pad)), mode="reflect")           # (B, T + nfft)
    need = (n_frames_pad - 1) * hop + left + k_pad
    extra = max(0, need - (T + nfft))
    if extra:
        xp = jnp.pad(xp, ((0, 0), (0, extra)))                      # zero pad-frames
    # TODO(synk): replace this XLA gather (duplicates signal ~window_len/hop x in
    # HBM) with in-kernel framing (manual DMA over a contiguous per-tile slab).
    idx = (left + jnp.arange(k_pad))[:, None] + (jnp.arange(n_frames_pad) * hop)[None, :]
    frames_t = xp[:, idx].astype(compute_dtype)                     # (B, k_pad, Fpad)

    basis = _make_basis(nfft, window_len, nbins_pad, k_pad, left,
                        jnp.dtype(compute_dtype).name)              # (2*nbins_pad, k_pad)

    # --- VMEM budget: resident basis (double-buffered constant-index block) +
    #     double-buffered frame/out tiles, capped below physical VMEM (v7x: 64 MiB).
    itemsize = jnp.dtype(compute_dtype).itemsize
    want = int(1.25 * (2 * basis.size * itemsize        # basis, double-buffered
                       + 2 * k_pad * tf * itemsize      # frames tile x2
                       + 2 * nbins_pad * tf * 4         # out tile x2
                       + 2 * 2 * nbins_pad * tf * 4)    # f32 matmul result + headroom
               ) + (4 << 20)
    try:
        phys = int(pltpu.get_tpu_info().vmem_capacity_bytes)
    except Exception:
        phys = 64 << 20                                  # conservative (v7x per-TC)
    cap = max(16 << 20, phys - (8 << 20))
    vmem_limit = min(max(want, 32 << 20), cap)

    kernel = functools.partial(_stft_mag_kernel, nbins_pad=nbins_pad)
    out = pl.pallas_call(
        kernel,
        out_shape=jax.ShapeDtypeStruct((B, nbins_pad, n_frames_pad), jnp.float32),
        grid_spec=pltpu.PrefetchScalarGridSpec(
            num_scalar_prefetch=0,
            grid=(B, n_frames_pad // tf),
            in_specs=[
                # Resident basis (constant index map).  Post K-trim its
                # double-buffered footprint (~10.6 MB bf16 at nfft=2048/win=1200)
                # fits even v7x's 32 MiB default scoped VMEM, so we avoid relying
                # on pl.Buffered(1) single-buffering.
                pl.BlockSpec((2 * nbins_pad, k_pad), lambda b, i: (0, 0)),
                pl.BlockSpec((1, k_pad, tf), lambda b, i: (b, 0, i)),     # frames tile
            ],
            out_specs=pl.BlockSpec((1, nbins_pad, tf), lambda b, i: (b, 0, i)),
        ),
        compiler_params=pltpu.CompilerParams(
            dimension_semantics=("parallel", "parallel"),
            vmem_limit_bytes=vmem_limit,
        ),
    )(basis, frames_t)

    if not strip_padding:
        # Padded bin rows / frame columns hold garbage; only (:, :nbins, :n_frames)
        # is valid.  Returning the padded slab avoids a whole-array XLA slice-copy.
        return out
    return out[:, :nbins, :n_frames]


if __name__ == "__main__":
    # Small, module-consistent configuration (same structure as nfft=2048/hop=300/
    # win_length=1200, scaled down so the demo stays tiny).
    nfft, hop, window_len = 256, 64, 160
    B, T = 2, 960   # -> n_frames = 1 + 960//64 = 16, nbins = 129

    key = jax.random.PRNGKey(0)
    x = jax.random.normal(key, (B, T), dtype=jnp.float32)

    out = stft_mag(x, nfft, hop, window_len)
    out = jax.block_until_ready(out)

    # Reference check (pure JAX rfft over full nfft frames) to validate semantics.
    pad = nfft // 2
    n_frames = 1 + T // hop
    xp = jnp.pad(x, ((0, 0), (pad, pad)), mode="reflect")
    starts = jnp.arange(n_frames) * hop
    idx = starts[:, None] + jnp.arange(nfft)[None, :]
    frames = xp[:, idx]                                           # (B, n_frames, nfft)
    w = 0.5 * (1.0 - jnp.cos(2.0 * jnp.pi * jnp.arange(window_len) / window_len))
    left = (nfft - window_len) // 2
    w_pad = jnp.zeros((nfft,), jnp.float32).at[left:left + window_len].set(w)
    ref = jnp.abs(jnp.fft.rfft(frames * w_pad, n=nfft, axis=-1)).transpose(0, 2, 1)

    assert out.shape == (B, nfft // 2 + 1, n_frames), out.shape
    err = float(jnp.max(jnp.abs(out - ref)))
    scale = float(jnp.max(jnp.abs(ref)))
    # bf16 operands (f32 accumulation): allow ~2% relative error on magnitudes.
    assert err <= 2e-2 * scale + 1e-2, (err, scale)
    print("KERNEL_OK")
</pallas_src>

<mosaic_0001>
module attributes {stable_mosaic.version = 11 : i64} {
  func.func @_stft_mag_kernel(%arg0: i32, %arg1: i32, %arg2: memref<272x256xbf16, #tpu.memory_space<vmem>>, %arg3: memref<1x256x128xbf16, #tpu.memory_space<vmem>>, %arg4: memref<1x136x128xf32, #tpu.memory_space<vmem>>) attributes {dimension_semantics = [#tpu.dimension_semantics<parallel>, #tpu.dimension_semantics<parallel>], iteration_bounds = array<i64: 2, 1>, scalar_prefetch = 0 : i64, scratch_operands = 0 : i64, tpu.core_type = #tpu.core_type<tc>, window_params = [{pipeline_mode = #tpu.pipeline_mode<synchronous>, transform_indices = @transform_0, window_bounds = array<i64: 272, 256>}, {transform_indices = @transform_1, window_bounds = array<i64: 1, 256, 128>}, {transform_indices = @transform_2, window_bounds = array<i64: 1, 136, 128>}]} {
    %c0 = arith.constant 0 : index
    %c0_0 = arith.constant 0 : index
    %0 = vector.load %arg2[%c0, %c0_0] : memref<272x256xbf16, #tpu.memory_space<vmem>>, vector<272x256xbf16>
    %c0_1 = arith.constant 0 : index
    %c0_2 = arith.constant 0 : index
    %c0_3 = arith.constant 0 : index
    %1 = vector.load %arg3[%c0_1, %c0_2, %c0_3] : memref<1x256x128xbf16, #tpu.memory_space<vmem>>, vector<1x256x128xbf16>
    %2 = vector.shape_cast %1 : vector<1x256x128xbf16> to vector<256x128xbf16>
    %cst = arith.constant dense<0.000000e+00> : vector<272x128xf32>
    %3 = tpu.matmul %0, %2, %cst {dimension_numbers = #tpu.dot_dimension_numbers<[1], [0], [0], [1], [0, 0, 1, 1], [], []>} : vector<272x256xbf16>, vector<256x128xbf16>, vector<272x128xf32> -> vector<272x128xf32>
    %4 = vector.extract_strided_slice %3 {offsets = [0, 0], sizes = [136, 128], strides = [1, 1]} : vector<272x128xf32> to vector<136x128xf32>
    %5 = vector.extract_strided_slice %3 {offsets = [136, 0], sizes = [136, 128], strides = [1, 1]} : vector<272x128xf32> to vector<136x128xf32>
    %6 = arith.mulf %4, %4 : vector<136x128xf32>
    %7 = arith.mulf %5, %5 : vector<136x128xf32>
    %8 = arith.addf %6, %7 : vector<136x128xf32>
    %9 = math.sqrt %8 : vector<136x128xf32>
    %c0_4 = arith.constant 0 : index
    %c0_5 = arith.constant 0 : index
    %c0_6 = arith.constant 0 : index
    %10 = vector.load %arg4[%c0_4, %c0_5, %c0_6] : memref<1x136x128xf32, #tpu.memory_space<vmem>>, vector<1x136x128xf32>
    %11 = vector.shape_cast %10 : vector<1x136x128xf32> to vector<136x128xf32>
    %12 = vector.shape_cast %9 : vector<136x128xf32> to vector<1x136x128xf32>
    tpu.vector_store %arg4[%c0_4, %c0_5, %c0_6], %12 {strides = array<i32>} : memref<1x136x128xf32, #tpu.memory_space<vmem>>, vector<1x136x128xf32>,
    return
  }
  func.func @transform_0(%arg0: i32, %arg1: i32) -> (i32, i32) {
    %c0_i32 = arith.constant 0 : i32
    %c0_i32_0 = arith.constant 0 : i32
    %c0_i32_1 = arith.constant 0 : i32
    return %c0_i32, %c0_i32_0 : i32, i32
  }
  func.func @transform_1(%arg0: i32, %arg1: i32) -> (i32, i32, i32) {
    %c0_i32 = arith.constant 0 : i32
    %c0_i32_0 = arith.constant 0 : i32
    return %arg0, %c0_i32, %arg1 : i32, i32, i32
  }
  func.func @transform_2(%arg0: i32, %arg1: i32) -> (i32, i32, i32) {
    %c0_i32 = arith.constant 0 : i32
    %c0_i32_0 = arith.constant 0 : i32
    return %arg0, %c0_i32, %arg1 : i32, i32, i32
  }
}

</mosaic_0001>

<llo_original>
// kernel: tpu_custom_call.1
$region0: #{tpu_custom_call.1}
  #allocation0 [shape = 'u32[]', space=smem, size = 0x4, offset = 0x4, fixed_abs, tag = 'smem constant byte address 0x4 - core index']
  #allocation1 [shape = 'u32[144,128]{1,0:T(1,128)}', space=vmem, size = 0x12000, scoped, tag = 'internal scratch']
  %s0 = inlined_call_operand.hbm [shape: bf16[272,256], index: 0, kind: input, shape index: {}]
  %s1 = inlined_call_operand.hbm [shape: bf16[2,256,128], index: 1, kind: input, shape index: {}]
  %s2 = inlined_call_operand.hbm [shape: f32[2,136,128], index: 2, kind: output, shape index: {}]
  %s3 = sld [smem:[#allocation0]]
  $region49: #{tpu_custom_call.1} parent=0
    _
  %s5 = ssub.s32 1, %s3
  %s6 = scalar_select 0, %s5, %s3
  $region1: #{tpu_custom_call.1} parent=0
    #allocation2 [shape = 'u8[139264]{0}', space=vmem, size = 0x22000, scoped, tag = 'input window, operand 0, single buffered']
    #allocation3 [shape = 's32[2]{0}', space=sflag, size = 0x8, scoped, tag = 'scoped memory for tpu_custom_call.1']
    #allocation4 [shape = 's32[2]{0}', space=sflag, size = 0x8, scoped, tag = 'scoped memory for tpu_custom_call.1']
    #allocation5 [shape = 'u8[131072]{0}', space=vmem, size = 0x20000, scoped, tag = 'input window, operand 1']
    #allocation6 [shape = 's32[2]{0}', space=sflag, size = 0x8, scoped, tag = 'scoped memory for tpu_custom_call.1']
    #allocation7 [shape = 'u8[139264]{0}', space=vmem, size = 0x22000, scoped, tag = 'output window, operand 0']
    %7 = vsyncpa [#allocation3], 0
    %8 = vsyncpa [#allocation6], 0
    %s9 = scalar_lea.sflag [#allocation6], 1
    %10 = vsyncpa %s9, 0
    %11 = vsyncpa [#allocation4], 0
    %s12 = scalar_lea.sflag [#allocation4], 1
    %13 = vsyncpa %s12, 0
    loop: start=0, step=1, limit=4
    $region2: #{tpu_custom_call.1} parent=1 // loop_pre_header
      _
    $region3: #{tpu_custom_call.1} parent=1 // loop_header
      %s15 = sphi 0, %s19
      %p16 = scmp.ge.s32.totalorder %s15, 4
      %s22 = sphi 0, %s34
      %s23 = sphi 0, %s30
      %s24 = sphi 0, %s22
      %s25 = sphi 0, %s23
      %s26 = sphi 0, %s24
      %s27 = sphi 0, %s25
      %s35 = sphi 0, %s35
      %s37 = sphi 0, %s35
      %s38 = sphi 0, %s37
      %s52 = sphi 0, %s38
      %s60 = sphi 0, %s62
      %s63 = sphi 0, %s60
      %s64 = sphi 0, %s63
      %s80 = sphi 0, %s64
      %s88 = sphi 0, %s90
      %s91 = sphi 0, %s88
      %s92 = sphi 0, %s91
      %s108 = sphi 0, %s92
    $region4: #{tpu_custom_call.1} parent=1 // loop_header_branch
      %18 = sbr.rel (%p16) target = $region8
    $region5: #{tpu_custom_call.1} parent=1 // loop_body
      %s20 = ssub.s32 %s15, 1
      %s21 = ssub.s32 %s15, 2
      %s28 = sadd.s32 1, %s23
      %p29 = scmp.ge.s32.totalorder %s28, 1
      %s30 = scalar_select %p29, 0, %s28
      %s31 = sadd.s32 1, %s22
      %s32 = scalar_select %p29, %s31, %s22
      %p33 = scmp.ge.s32.totalorder %s32, 2
      %s34 = scalar_select %p33, 0, %s32
      %s36 = sadd.s32 %s35, 1
      %p39 = scmp.eq.s32.totalorder %s15, 1
      %p40 = scmp.ne.s32.totalorder %s35, %s37
      %p41 = scmp.eq.s32.totalorder %s15, 0
      %p42 = por %p40, %p41
      %p43 = scmp.ne.s32.totalorder %s35, %s37
      %p44 = scmp.eq.s32.totalorder %s20, 1
      %p45 = por %p43, %p44
      %p46 = scmp.ne.s32.totalorder %s37, %s38
      %p47 = scmp.eq.s32.totalorder %s20, 0
      %p48 = por %p46, %p47
      %p49 = scmp.ne.s32.totalorder %s37, %s38
      %p50 = scmp.eq.s32.totalorder %s21, 1
      %p51 = por %p49, %p50
      %p53 = scmp.ne.s32.totalorder %s38, %s52
      %p54 = scmp.eq.s32.totalorder %s21, 0
      %p55 = por %p53, %p54
      %s56 = ssub.s32 %s22, %s34
      %s57 = ssub.s32 %s23, %s30
      %s58 = sor.u32 %s56, %s57
      %p59 = scmp.eq.s32.totalorder %s58, 0
      %s61 = sadd.s32 %s60, 1
      %s62 = scalar_select %p59, %s60, %s61
      %p65 = pneg %p59
      %p66 = scmp.eq.s32.totalorder %s15, 1
      %p67 = por %p65, %p66
      %p68 = scmp.ne.s32.totalorder %s60, %s63
      %p69 = scmp.eq.s32.totalorder %s15, 0
      %p70 = por %p68, %p69
      %p71 = scmp.ne.s32.totalorder %s60, %s63
      %p72 = scmp.eq.s32.totalorder %s20, 1
      %p73 = por %p71, %p72
      %p74 = scmp.ne.s32.totalorder %s63, %s64
      %p75 = scmp.eq.s32.totalorder %s20, 0
      %p76 = por %p74, %p75
      %p77 = scmp.ne.s32.totalorder %s63, %s64
      %p78 = scmp.eq.s32.totalorder %s21, 1
      %p79 = por %p77, %p78
      %p81 = scmp.ne.s32.totalorder %s64, %s80
      %p82 = scmp.eq.s32.totalorder %s21, 0
      %p83 = por %p81, %p82
      %s84 = ssub.s32 %s22, %s34
      %s85 = ssub.s32 %s23, %s30
      %s86 = sor.u32 %s84, %s85
      %p87 = scmp.eq.s32.totalorder %s86, 0
      %s89 = sadd.s32 %s88, 1
      %s90 = scalar_select %p87, %s88, %s89
      %p93 = pneg %p87
      %p94 = scmp.eq.s32.totalorder %s15, 1
      %p95 = por %p93, %p94
      %p96 = scmp.ne.s32.totalorder %s88, %s91
      %p97 = scmp.eq.s32.totalorder %s15, 0
      %p98 = por %p96, %p97
      %p99 = scmp.ne.s32.totalorder %s88, %s91
      %p100 = scmp.eq.s32.totalorder %s20, 1
      %p101 = por %p99, %p100
      %p102 = scmp.ne.s32.totalorder %s91, %s92
      %p103 = scmp.eq.s32.totalorder %s20, 0
      %p104 = por %p102, %p103
      %p105 = scmp.ne.s32.totalorder %s91, %s92
      %p106 = scmp.eq.s32.totalorder %s21, 1
      %p107 = por %p105, %p106
      %p109 = scmp.ne.s32.totalorder %s92, %s108
      %p110 = scmp.eq.s32.totalorder %s21, 0
      %p111 = por %p109, %p110
      %p112 = scmp.le.s32.totalorder 1, %s15
      %p113 = scmp.lt.s32.totalorder %s15, 3
      %p114 = pnand %p112, %p113
      %p115 = pneg %p114
      // Predicated region
      $region9: #{tpu_custom_call.1} parent=5 // pred_check
        _
      $region10: #{tpu_custom_call.1} parent=5 // pred_check_branch
        %117 = sbr.rel (%p114) target = $region12
      $region11: #{tpu_custom_call.1} parent=5 // pred_region
        %s118 = ssub.s32 %s15, 1
        // Predicated region
        $region13: #{tpu_custom_call.1} parent=11 // pred_check
          %p119 = pneg %p48
        $region14: #{tpu_custom_call.1} parent=11 // pred_check_branch
          %121 = sbr.rel (%p119) target = $region16
        $region15: #{tpu_custom_call.1} parent=11 // pred_region
          %s123 = ssub.s32 4352, 4352
          %124 = vsyncadd [#allocation3], %s123
          %s125 = sshll.u32 [#allocation2], 4
          %s126 = int_to_ptr.vmem [resolvable:$true] %s125
          %131 = dma.hbm_to_vmem [thread:$0]  %s0, 4352, %s126, [#allocation3], 128, 128, 8
        $region16: #{tpu_custom_call.1} parent=11 // pred_fallthru
          _
      $region12: #{tpu_custom_call.1} parent=5 // pred_fallthru
        _
      %p132 = scmp.lt.s32.totalorder %s15, 2
      // Predicated region
      $region17: #{tpu_custom_call.1} parent=5 // pred_check
        %p133 = pneg %p132
      $region18: #{tpu_custom_call.1} parent=5 // pred_check_branch
        %135 = sbr.rel (%p133) target = $region20
      $region19: #{tpu_custom_call.1} parent=5 // pred_region
        // Predicated region
        $region21: #{tpu_custom_call.1} parent=19 // pred_check
          %p136 = pneg %p70
        $region22: #{tpu_custom_call.1} parent=19 // pred_check_branch
          %138 = sbr.rel (%p136) target = $region24
        $region23: #{tpu_custom_call.1} parent=19 // pred_region
          %s139 = sand.u32 %s60, 1
          %s140 = scalar_lea.sflag [#allocation6], %s139
          %s141 = sand.u32 %s60, 1
          %s142 = smul.addr %s141, 128
          %s143 = scalar_lea.vmem [#allocation5], %s142
          %s145 = ssub.s32 2048, 2048
          %146 = vsyncadd %s140, %s145
          %s147 = smul.addr %s22, 32
          %s148 = sadd.s32 %s23, %s147
          %s149 = smul.addr %s148, 64
          %s150 = scalar_lea.hbm %s1, %s149
          %s151 = sshll.u32 %s143, 4
          %s152 = int_to_ptr.vmem [resolvable:$true] %s151
          %157 = dma.hbm_to_vmem [thread:$0]  %s150, 2048, %s152, %s140, 64, 64, 4
        $region24: #{tpu_custom_call.1} parent=19 // pred_fallthru
          _
      $region20: #{tpu_custom_call.1} parent=5 // pred_fallthru
        _
      %p158 = scmp.le.s32.totalorder 1, %s15
      %p159 = scmp.lt.s32.totalorder %s15, 3
      %p160 = pnand %p158, %p159
      %p161 = pneg %p160
      // Predicated region
      $region25: #{tpu_custom_call.1} parent=5 // pred_check
        _
      $region26: #{tpu_custom_call.1} parent=5 // pred_check_branch
        %163 = sbr.rel (%p160) target = $region28
      $region27: #{tpu_custom_call.1} parent=5 // pred_region
        %s164 = ssub.s32 %s15, 1
        // Predicated region
        $region29: #{tpu_custom_call.1} parent=27 // pred_check
          %p165 = pneg %p48
        $region30: #{tpu_custom_call.1} parent=27 // pred_check_branch
          %167 = sbr.rel (%p165) target = $region32
        $region31: #{tpu_custom_call.1} parent=27 // pred_region
          %168 = dma.done [#allocation3], 4352
        $region32: #{tpu_custom_call.1} parent=27 // pred_fallthru
          _
        %s169 = sand.u32 %s63, 1
        %s170 = scalar_lea.sflag [#allocation6], %s169
        %s171 = sand.u32 %s63, 1
        %s172 = smul.addr %s171, 128
        %s173 = scalar_lea.vmem [#allocation5], %s172
        // Predicated region
        $region33: #{tpu_custom_call.1} parent=27 // pred_check
          %p174 = pneg %p76
        $region34: #{tpu_custom_call.1} parent=27 // pred_check_branch
          %176 = sbr.rel (%p174) target = $region36
        $region35: #{tpu_custom_call.1} parent=27 // pred_region
          %177 = dma.done %s170, 2048
        $region36: #{tpu_custom_call.1} parent=27 // pred_fallthru
          _
        %p178 = pneg %p48
        %p179 = pneg %p45
        %s180 = sand.u32 %s63, 1
        %s181 = scalar_lea.sflag [#allocation6], %s180
        %s182 = sand.u32 %s63, 1
        %s183 = smul.addr %s182, 128
        %s184 = scalar_lea.vmem [#allocation5], %s183
        %p185 = pneg %p76
        %p186 = pneg %p73
        %p187 = pneg %p104
        %p188 = pneg %p101
        %s189 = sand.u32 %s91, 1
        %s190 = scalar_lea.sflag [#allocation4], %s189
        %s191 = sand.u32 %s91, 1
        %s192 = smul.addr %s191, 136
        %s193 = scalar_lea.vmem [#allocation7], %s192
        %v195 = vld [vmem:[#allocation2] sm:$0xff]
        %v196 = vld [vmem:[#allocation2 + $0x8] sm:$0xff]
        %v197 = vld [vmem:[#allocation2 + $0x10] sm:$0xff]
        %v198 = vld [vmem:[#allocation2 + $0x18] sm:$0xff]
        %v199 = vld [vmem:[#allocation2 + $0x20] sm:$0xff]
        %v200 = vld [vmem:[#allocation2 + $0x28] sm:$0xff]
        %v201 = vld [vmem:[#allocation2 + $0x30] sm:$0xff]
        %v202 = vld [vmem:[#allocation2 + $0x38] sm:$0xff]
        %v203 = vld [vmem:[#allocation2 + $0x40] sm:$0xff]
        %v204 = vld [vmem:[#allocation2 + $0x48] sm:$0xff]
        %v205 = vld [vmem:[#allocation2 + $0x50] sm:$0xff]
        %v206 = vld [vmem:[#allocation2 + $0x58] sm:$0xff]
        %v207 = vld [vmem:[#allocation2 + $0x60] sm:$0xff]
        %v208 = vld [vmem:[#allocation2 + $0x68] sm:$0xff]
        %v209 = vld [vmem:[#allocation2 + $0x70] sm:$0xff]
        %v210 = vld [vmem:[#allocation2 + $0x78] sm:$0xff]
        %v211 = vld [vmem:[#allocation2 + $0x80] sm:$0xff]
        %v212 = vld [vmem:[#allocation2 + $0x88] sm:$0xff]
        %v213 = vld [vmem:[#allocation2 + $0x90] sm:$0xff]
        %v214 = vld [vmem:[#allocation2 + $0x98] sm:$0xff]
        %v215 = vld [vmem:[#allocation2 + $0xa0] sm:$0xff]
        %v216 = vld [vmem:[#allocation2 + $0xa8] sm:$0xff]
        %v217 = vld [vmem:[#allocation2 + $0xb0] sm:$0xff]
        %v218 = vld [vmem:[#allocation2 + $0xb8] sm:$0xff]
        %v219 = vld [vmem:[#allocation2 + $0xc0] sm:$0xff]
        %v220 = vld [vmem:[#allocation2 + $0xc8] sm:$0xff]
        %v221 = vld [vmem:[#allocation2 + $0xd0] sm:$0xff]
        %v222 = vld [vmem:[#allocation2 + $0xd8] sm:$0xff]
        %v223 = vld [vmem:[#allocation2 + $0xe0] sm:$0xff]
        %v224 = vld [vmem:[#allocation2 + $0xe8] sm:$0xff]
        %v225 = vld [vmem:[#allocation2 + $0xf0] sm:$0xff]
        %v226 = vld [vmem:[#allocation2 + $0xf8] sm:$0xff]
        %v227 = vld [vmem:[#allocation2 + $0x100] sm:$0xff]
        %v228 = vld [vmem:[#allocation2 + $0x108] sm:$0xff]
        %v229 = vld [vmem:[%s173] sm:$0xf]
        %v230 = vld [vmem:[%s173 + $0x4] sm:$0xf]
        %v231 = vld [vmem:[%s173 + $0x8] sm:$0xf]
        %v232 = vld [vmem:[%s173 + $0xc] sm:$0xf]
        %v233 = vld [vmem:[%s173 + $0x10] sm:$0xf]
        %v234 = vld [vmem:[%s173 + $0x14] sm:$0xf]
        %v235 = vld [vmem:[%s173 + $0x18] sm:$0xf]
        %v236 = vld [vmem:[%s173 + $0x1c] sm:$0xf]
        %v237 = vld [vmem:[%s173 + $0x20] sm:$0xf]
        %v238 = vld [vmem:[%s173 + $0x24] sm:$0xf]
        %v239 = vld [vmem:[%s173 + $0x28] sm:$0xf]
        %v240 = vld [vmem:[%s173 + $0x2c] sm:$0xf]
        %v241 = vld [vmem:[%s173 + $0x30] sm:$0xf]
        %v242 = vld [vmem:[%s173 + $0x34] sm:$0xf]
        %v243 = vld [vmem:[%s173 + $0x38] sm:$0xf]
        %v244 = vld [vmem:[%s173 + $0x3c] sm:$0xf]
        %v245 = vld [vmem:[%s173 + $0x40] sm:$0xf]
        %v246 = vld [vmem:[%s173 + $0x44] sm:$0xf]
        %v247 = vld [vmem:[%s173 + $0x48] sm:$0xf]
        %v248 = vld [vmem:[%s173 + $0x4c] sm:$0xf]
        %v249 = vld [vmem:[%s173 + $0x50] sm:$0xf]
        %v250 = vld [vmem:[%s173 + $0x54] sm:$0xf]
        %v251 = vld [vmem:[%s173 + $0x58] sm:$0xf]
        %v252 = vld [vmem:[%s173 + $0x5c] sm:$0xf]
        %v253 = vld [vmem:[%s173 + $0x60] sm:$0xf]
        %v254 = vld [vmem:[%s173 + $0x64] sm:$0xf]
        %v255 = vld [vmem:[%s173 + $0x68] sm:$0xf]
        %v256 = vld [vmem:[%s173 + $0x6c] sm:$0xf]
        %v257 = vld [vmem:[%s173 + $0x70] sm:$0xf]
        %v258 = vld [vmem:[%s173 + $0x74] sm:$0xf]
        %v259 = vld [vmem:[%s173 + $0x78] sm:$0xf]
        %v260 = vld [vmem:[%s173 + $0x7c] sm:$0xf]
        %v295 = vunpack.c.l.b16 %v195
        %v296 = vunpack.c.h.b16 %v195
        %v297 = vunpack.c.l.b16 %v196
        %v298 = vunpack.c.h.b16 %v196
        %v299 = vunpack.c.l.b16 %v197
        %v300 = vunpack.c.h.b16 %v197
        %v301 = vunpack.c.l.b16 %v198
        %v302 = vunpack.c.h.b16 %v198
        %v303 = vunpack.c.l.b16 %v199
        %v304 = vunpack.c.h.b16 %v199
        %v305 = vunpack.c.l.b16 %v200
        %v306 = vunpack.c.h.b16 %v200
        %v307 = vunpack.c.l.b16 %v201
        %v308 = vunpack.c.h.b16 %v201
        %v309 = vunpack.c.l.b16 %v202
        %v310 = vunpack.c.h.b16 %v202
        %v311 = vunpack.c.l.b16 %v203
        %v312 = vunpack.c.h.b16 %v203
        %v313 = vunpack.c.l.b16 %v204
        %v314 = vunpack.c.h.b16 %v204
        %v315 = vunpack.c.l.b16 %v205
        %v316 = vunpack.c.h.b16 %v205
        %v317 = vunpack.c.l.b16 %v206
        %v318 = vunpack.c.h.b16 %v206
        %v319 = vunpack.c.l.b16 %v207
        %v320 = vunpack.c.h.b16 %v207
        %v321 = vunpack.c.l.b16 %v208
        %v322 = vunpack.c.h.b16 %v208
        %v323 = vunpack.c.l.b16 %v209
        %v324 = vunpack.c.h.b16 %v209
        %v325 = vunpack.c.l.b16 %v210
        %v326 = vunpack.c.h.b16 %v210
        %v327 = vunpack.c.l.b16 %v211
        %v328 = vunpack.c.h.b16 %v211
        %v329 = vunpack.c.l.b16 %v212
        %v330 = vunpack.c.h.b16 %v212
        %v331 = vunpack.c.l.b16 %v213
        %v332 = vunpack.c.h.b16 %v213
        %v333 = vunpack.c.l.b16 %v214
        %v334 = vunpack.c.h.b16 %v214
        %v335 = vunpack.c.l.b16 %v215
        %v336 = vunpack.c.h.b16 %v215
        %v337 = vunpack.c.l.b16 %v216
        %v338 = vunpack.c.h.b16 %v216
        %v339 = vunpack.c.l.b16 %v217
        %v340 = vunpack.c.h.b16 %v217
        %v341 = vunpack.c.l.b16 %v218
        %v342 = vunpack.c.h.b16 %v218
        %v343 = vunpack.c.l.b16 %v219
        %v344 = vunpack.c.h.b16 %v219
        %v345 = vunpack.c.l.b16 %v220
        %v346 = vunpack.c.h.b16 %v220
        %v347 = vunpack.c.l.b16 %v221
        %v348 = vunpack.c.h.b16 %v221
        %v349 = vunpack.c.l.b16 %v222
        %v350 = vunpack.c.h.b16 %v222
        %v351 = vunpack.c.l.b16 %v223
        %v352 = vunpack.c.h.b16 %v223
        %v353 = vunpack.c.l.b16 %v224
        %v354 = vunpack.c.h.b16 %v224
        %v355 = vunpack.c.l.b16 %v225
        %v356 = vunpack.c.h.b16 %v225
        %v357 = vunpack.c.l.b16 %v226
        %v358 = vunpack.c.h.b16 %v226
        %v359 = vunpack.c.l.b16 %v227
        %v360 = vunpack.c.h.b16 %v227
        %v361 = vunpack.c.l.b16 %v228
        %v362 = vunpack.c.h.b16 %v228
        %v363 = vpack.c.b16 %v297, %v295
        %v364 = vpack.c.b16 %v298, %v296
        %v365 = vpack.c.b16 %v301, %v299
        %v366 = vpack.c.b16 %v302, %v300
        %v367 = vpack.c.b16 %v305, %v303
        %v368 = vpack.c.b16 %v306, %v304
        %v369 = vpack.c.b16 %v309, %v307
        %v370 = vpack.c.b16 %v310, %v308
        %v371 = vpack.c.b16 %v313, %v311
        %v372 = vpack.c.b16 %v314, %v312
        %v373 = vpack.c.b16 %v317, %v315
        %v374 = vpack.c.b16 %v318, %v316
        %v375 = vpack.c.b16 %v321, %v319
        %v376 = vpack.c.b16 %v322, %v320
        %v377 = vpack.c.b16 %v325, %v323
        %v378 = vpack.c.b16 %v326, %v324
        %v379 = vpack.c.b16 %v329, %v327
        %v380 = vpack.c.b16 %v330, %v328
        %v381 = vpack.c.b16 %v333, %v331
        %v382 = vpack.c.b16 %v334, %v332
        %v383 = vpack.c.b16 %v337, %v335
        %v384 = vpack.c.b16 %v338, %v336
        %v385 = vpack.c.b16 %v341, %v339
        %v386 = vpack.c.b16 %v342, %v340
        %v387 = vpack.c.b16 %v345, %v343
        %v388 = vpack.c.b16 %v346, %v344
        %v389 = vpack.c.b16 %v349, %v347
        %v390 = vpack.c.b16 %v350, %v348
        %v391 = vpack.c.b16 %v353, %v351
        %v392 = vpack.c.b16 %v354, %v352
        %v393 = vpack.c.b16 %v357, %v355
        %v394 = vpack.c.b16 %v358, %v356
        %v395 = vpack.c.b16 %v361, %v359
        %v396 = vpack.c.b16 %v362, %v360
        %v463 = vunpack.c.l.b16 %v229
        %v464 = vunpack.c.l.b16 %v230
        %v465 = vunpack.c.l.b16 %v231
        %v466 = vunpack.c.l.b16 %v232
        %v467 = vunpack.c.l.b16 %v233
        %v468 = vunpack.c.l.b16 %v234
        %v469 = vunpack.c.l.b16 %v235
        %v470 = vunpack.c.l.b16 %v236
        %v471 = vunpack.c.l.b16 %v237
        %v472 = vunpack.c.l.b16 %v238
        %v473 = vunpack.c.l.b16 %v239
        %v474 = vunpack.c.l.b16 %v240
        %v475 = vunpack.c.l.b16 %v241
        %v476 = vunpack.c.l.b16 %v242
        %v477 = vunpack.c.l.b16 %v243
        %v478 = vunpack.c.l.b16 %v244
        %v479 = vunpack.c.l.b16 %v245
        %v480 = vunpack.c.l.b16 %v246
        %v481 = vunpack.c.l.b16 %v247
        %v482 = vunpack.c.l.b16 %v248
        %v483 = vunpack.c.l.b16 %v249
        %v484 = vunpack.c.l.b16 %v250
        %v485 = vunpack.c.l.b16 %v251
        %v486 = vunpack.c.l.b16 %v252
        %v487 = vunpack.c.l.b16 %v253
        %v488 = vunpack.c.l.b16 %v254
        %v489 = vunpack.c.l.b16 %v255
        %v490 = vunpack.c.l.b16 %v256
        %v491 = vunpack.c.l.b16 %v257
        %v492 = vunpack.c.l.b16 %v258
        %v493 = vunpack.c.l.b16 %v259
        %v494 = vunpack.c.l.b16 %v260
        %v495 = vpack.c.b16 %v464, %v463
        %v496 = vpack.c.b16 %v466, %v465
        %v497 = vpack.c.b16 %v468, %v467
        %v498 = vpack.c.b16 %v470, %v469
        %v499 = vpack.c.b16 %v472, %v471
        %v500 = vpack.c.b16 %v474, %v473
        %v501 = vpack.c.b16 %v476, %v475
        %v502 = vpack.c.b16 %v478, %v477
        %v503 = vpack.c.b16 %v480, %v479
        %v504 = vpack.c.b16 %v482, %v481
        %v505 = vpack.c.b16 %v484, %v483
        %v506 = vpack.c.b16 %v486, %v485
        %v507 = vpack.c.b16 %v488, %v487
        %v508 = vpack.c.b16 %v490, %v489
        %v509 = vpack.c.b16 %v492, %v491
        %v510 = vpack.c.b16 %v494, %v493
        %527 = vmatprep.subr.bf16.mxu0 0
        %528 = vmatpush1.bf16.msra.mxu0 %v502
        %529 = vmatprep.subr.bf16.mxu0 0
        %530 = vmatpush1.bf16.msra.mxu0 %v501
        %531 = vmatprep.subr.bf16.mxu0 0
        %532 = vmatpush1.bf16.msra.mxu0 %v500
        %533 = vmatprep.subr.bf16.mxu0 0
        %534 = vmatpush1.bf16.msra.mxu0 %v499
        %535 = vmatprep.subr.bf16.mxu0 0
        %536 = vmatpush1.bf16.msra.mxu0 %v498
        %537 = vmatprep.subr.bf16.mxu0 0
        %538 = vmatpush1.bf16.msra.mxu0 %v497
        %539 = vmatprep.subr.bf16.mxu0 0
        %540 = vmatpush1.bf16.msra.mxu0 %v496
        %541 = vmatprep.subr.bf16.mxu0 0
        %542 = vmatpush1.bf16.msra.mxu0 %v495
        %543 = vmatprep.subr.bf16.mxu0 0
        %544 = vmatpush2.bf16.msra.mxu0 %v510
        %545 = vmatprep.subr.bf16.mxu0 0
        %546 = vmatpush2.bf16.msra.mxu0 %v509
        %547 = vmatprep.subr.bf16.mxu0 0
        %548 = vmatpush2.bf16.msra.mxu0 %v508
        %549 = vmatprep.subr.bf16.mxu0 0
        %550 = vmatpush2.bf16.msra.mxu0 %v507
        %551 = vmatprep.subr.bf16.mxu0 0
        %552 = vmatpush2.bf16.msra.mxu0 %v506
        %553 = vmatprep.subr.bf16.mxu0 0
        %554 = vmatpush2.bf16.msra.mxu0 %v505
        %555 = vmatprep.subr.bf16.mxu0 0
        %556 = vmatpush2.bf16.msra.mxu0 %v504
        %557 = vmatprep.subr.bf16.mxu0 0
        %558 = vmatpush2.bf16.msra.mxu0 %v503
        %559 = vmatprep.mubr.bf16.mxu0 %v364
        %560 = vmatmul.mubr.bf16.gmra.mxu0 %v363
        %v561 = vpop.f32.mrf.mxu0
        %v562 = vadd.f32 0.0, %v561
        %v563 = vpop.f32.mrf.mxu0
        %v564 = vpop.f32.mrf.mxu0
        %v565 = vadd.f32 0.0, %v564
        %v566 = vpop.f32.mrf.mxu0
        %567 = vmatprep.mubr.bf16.mxu0 %v366
        %568 = vmatmul.mubr.bf16.gmra.mxu0 %v365
        %v569 = vpop.f32.mrf.mxu0
        %v570 = vadd.f32 0.0, %v569
        %v571 = vpop.f32.mrf.mxu0
        %v572 = vpop.f32.mrf.mxu0
        %v573 = vadd.f32 0.0, %v572
        %v574 = vpop.f32.mrf.mxu0
        %575 = vmatprep.mubr.bf16.mxu0 %v368
        %576 = vmatmul.mubr.bf16.gmra.mxu0 %v367
        %v577 = vpop.f32.mrf.mxu0
        %v578 = vadd.f32 0.0, %v577
        %v579 = vpop.f32.mrf.mxu0
        %v580 = vpop.f32.mrf.mxu0
        %v581 = vadd.f32 0.0, %v580
        %v582 = vpop.f32.mrf.mxu0
        %583 = vmatprep.mubr.bf16.mxu0 %v370
        %584 = vmatmul.mubr.bf16.gmra.mxu0 %v369
        %v585 = vpop.f32.mrf.mxu0
        %v586 = vadd.f32 0.0, %v585
        %v587 = vpop.f32.mrf.mxu0
        %v588 = vpop.f32.mrf.mxu0
        %v589 = vadd.f32 0.0, %v588
        %v590 = vpop.f32.mrf.mxu0
        %591 = vmatprep.mubr.bf16.mxu0 %v372
        %592 = vmatmul.mubr.bf16.gmra.mxu0 %v371
        %v593 = vpop.f32.mrf.mxu0
        %v594 = vadd.f32 0.0, %v593
        %v595 = vpop.f32.mrf.mxu0
        %v596 = vpop.f32.mrf.mxu0
        %v597 = vadd.f32 0.0, %v596
        %v598 = vpop.f32.mrf.mxu0
        %599 = vmatprep.mubr.bf16.mxu0 %v374
        %600 = vmatmul.mubr.bf16.gmra.mxu0 %v373
        %v601 = vpop.f32.mrf.mxu0
        %v602 = vadd.f32 0.0, %v601
        %v603 = vpop.f32.mrf.mxu0
        %v604 = vpop.f32.mrf.mxu0
        %v605 = vadd.f32 0.0, %v604
        %v606 = vpop.f32.mrf.mxu0
        %607 = vmatprep.mubr.bf16.mxu0 %v376
        %608 = vmatmul.mubr.bf16.gmra.mxu0 %v375
        %v609 = vpop.f32.mrf.mxu0
        %v610 = vadd.f32 0.0, %v609
        %v611 = vpop.f32.mrf.mxu0
        %v612 = vpop.f32.mrf.mxu0
        %v613 = vadd.f32 0.0, %v612
        %v614 = vpop.f32.mrf.mxu0
        %615 = vmatprep.mubr.bf16.mxu0 %v378
        %616 = vmatmul.mubr.bf16.gmra.mxu0 %v377
        %v617 = vpop.f32.mrf.mxu0
        %v618 = vadd.f32 0.0, %v617
        %v619 = vpop.f32.mrf.mxu0
        %v620 = vpop.f32.mrf.mxu0
        %v621 = vadd.f32 0.0, %v620
        %v622 = vpop.f32.mrf.mxu0
        %623 = vmatprep.mubr.bf16.mxu0 %v380
        %624 = vmatmul.mubr.bf16.gmra.mxu0 %v379
        %v625 = vpop.f32.mrf.mxu0
        %v626 = vadd.f32 0.0, %v625
        %v627 = vpop.f32.mrf.mxu0
        %v628 = vpop.f32.mrf.mxu0
        %v629 = vadd.f32 0.0, %v628
        %v630 = vpop.f32.mrf.mxu0
        %631 = vmatprep.mubr.bf16.mxu0 %v382
        %632 = vmatmul.mubr.bf16.gmra.mxu0 %v381
        %v633 = vpop.f32.mrf.mxu0
        %v634 = vadd.f32 0.0, %v633
        %v635 = vpop.f32.mrf.mxu0
        %v636 = vpop.f32.mrf.mxu0
        %v637 = vadd.f32 0.0, %v636
        %v638 = vpop.f32.mrf.mxu0
        %639 = vmatprep.mubr.bf16.mxu0 %v384
        %640 = vmatmul.mubr.bf16.gmra.mxu0 %v383
        %v641 = vpop.f32.mrf.mxu0
        %v642 = vadd.f32 0.0, %v641
        %v643 = vpop.f32.mrf.mxu0
        %v644 = vpop.f32.mrf.mxu0
        %v645 = vadd.f32 0.0, %v644
        %v646 = vpop.f32.mrf.mxu0
        %647 = vmatprep.mubr.bf16.mxu0 %v386
        %648 = vmatmul.mubr.bf16.gmra.mxu0 %v385
        %v649 = vpop.f32.mrf.mxu0
        %v650 = vadd.f32 0.0, %v649
        %v651 = vpop.f32.mrf.mxu0
        %v652 = vpop.f32.mrf.mxu0
        %v653 = vadd.f32 0.0, %v652
        %v654 = vpop.f32.mrf.mxu0
        %655 = vmatprep.mubr.bf16.mxu0 %v388
        %656 = vmatmul.mubr.bf16.gmra.mxu0 %v387
        %v657 = vpop.f32.mrf.mxu0
        %v658 = vadd.f32 0.0, %v657
        %v659 = vpop.f32.mrf.mxu0
        %v660 = vpop.f32.mrf.mxu0
        %v661 = vadd.f32 0.0, %v660
        %v662 = vpop.f32.mrf.mxu0
        %663 = vmatprep.mubr.bf16.mxu0 %v390
        %664 = vmatmul.mubr.bf16.gmra.mxu0 %v389
        %v665 = vpop.f32.mrf.mxu0
        %v666 = vadd.f32 0.0, %v665
        %v667 = vpop.f32.mrf.mxu0
        %v668 = vpop.f32.mrf.mxu0
        %v669 = vadd.f32 0.0, %v668
        %v670 = vpop.f32.mrf.mxu0
        %671 = vmatprep.mubr.bf16.mxu0 %v392
        %672 = vmatmul.mubr.bf16.gmra.mxu0 %v391
        %v673 = vpop.f32.mrf.mxu0
        %v674 = vadd.f32 0.0, %v673
        %v675 = vpop.f32.mrf.mxu0
        %v676 = vpop.f32.mrf.mxu0
        %v677 = vadd.f32 0.0, %v676
        %v678 = vpop.f32.mrf.mxu0
        %679 = vmatprep.mubr.bf16.mxu0 %v394
        %680 = vmatmul.mubr.bf16.gmra.mxu0 %v393
        %v681 = vpop.f32.mrf.mxu0
        %v682 = vadd.f32 0.0, %v681
        %v683 = vpop.f32.mrf.mxu0
        %v684 = vpop.f32.mrf.mxu0
        %v685 = vadd.f32 0.0, %v684
        %v686 = vpop.f32.mrf.mxu0
        %687 = vmatprep.mubr.bf16.mxu0 %v396
        %688 = vmatmul.mubr.bf16.gmra.mxu0 %v395
        %v689 = vpop.f32.mrf.mxu0
        %v690 = vadd.f32 0.0, %v689
        %v691 = vpop.f32.mrf.mxu0
        %v692 = vpop.f32.mrf.mxu0
        %v693 = vadd.f32 0.0, %v692
        %v694 = vpop.f32.mrf.mxu0
        %695 = vdwg.mxu0
        %v696 = vmul.f32 %v562, %v562
        %v697 = vmul.f32 %v565, %v565
        %v698 = vmul.f32 %v570, %v570
        %v699 = vmul.f32 %v573, %v573
        %v700 = vmul.f32 %v578, %v578
        %v701 = vmul.f32 %v581, %v581
        %v702 = vmul.f32 %v586, %v586
        %v703 = vmul.f32 %v589, %v589
        %v704 = vmul.f32 %v594, %v594
        %v705 = vmul.f32 %v597, %v597
        %v706 = vmul.f32 %v602, %v602
        %v707 = vmul.f32 %v605, %v605
        %v708 = vmul.f32 %v610, %v610
        %v709 = vmul.f32 %v613, %v613
        %v710 = vmul.f32 %v618, %v618
        %v711 = vmul.f32 %v621, %v621
        %v712 = vmul.f32 %v626, %v626
        %v713 = vmul.f32 %v629, %v629
        %v714 = vmul.f32 %v634, %v634
        %v715 = vmul.f32 %v637, %v637
        %v716 = vmul.f32 %v642, %v642
        %v717 = vmul.f32 %v645, %v645
        %v718 = vmul.f32 %v650, %v650
        %v719 = vmul.f32 %v653, %v653
        %v720 = vmul.f32 %v658, %v658
        %v721 = vmul.f32 %v661, %v661
        %v722 = vmul.f32 %v666, %v666
        %v723 = vmul.f32 %v669, %v669
        %v724 = vmul.f32 %v674, %v674
        %v725 = vmul.f32 %v677, %v677
        %v726 = vmul.f32 %v682, %v682
        %v727 = vmul.f32 %v685, %v685
        %v728 = vmul.f32 %v690, %v690
        %v729 = vmul.f32 %v693, %v693
        %v730 = vadd.f32 %v696, %v713
        %v731 = vadd.f32 %v697, %v714
        %v732 = vadd.f32 %v698, %v715
        %v733 = vadd.f32 %v699, %v716
        %v734 = vadd.f32 %v700, %v717
        %v735 = vadd.f32 %v701, %v718
        %v736 = vadd.f32 %v702, %v719
        %v737 = vadd.f32 %v703, %v720
        %v738 = vadd.f32 %v704, %v721
        %v739 = vadd.f32 %v705, %v722
        %v740 = vadd.f32 %v706, %v723
        %v741 = vadd.f32 %v707, %v724
        %v742 = vadd.f32 %v708, %v725
        %v743 = vadd.f32 %v709, %v726
        %v744 = vadd.f32 %v710, %v727
        %v745 = vadd.f32 %v711, %v728
        %v746 = vadd.f32 %v712, %v729
        %v747 = vrsqrt.pop %v730
        %v748 = vmul.f32 %v730, %v747
        %vm749 = vcmp.eq.f32.partialorder %v730, inf
        %v750 = vsel %vm749, %v730, %v748
        %vm751 = vcmp.eq.f32.partialorder %v730, 0.0
        %v752 = vand.u32 %v730, 2147483648
        %v753 = vsel %vm751, %v752, %v750
        %v754 = vrsqrt.pop %v731
        %v755 = vmul.f32 %v731, %v754
        %vm756 = vcmp.eq.f32.partialorder %v731, inf
        %v757 = vsel %vm756, %v731, %v755
        %vm758 = vcmp.eq.f32.partialorder %v731, 0.0
        %v759 = vand.u32 %v731, 2147483648
        %v760 = vsel %vm758, %v759, %v757
        %v761 = vrsqrt.pop %v732
        %v762 = vmul.f32 %v732, %v761
        %vm763 = vcmp.eq.f32.partialorder %v732, inf
        %v764 = vsel %vm763, %v732, %v762
        %vm765 = vcmp.eq.f32.partialorder %v732, 0.0
        %v766 = vand.u32 %v732, 2147483648
        %v767 = vsel %vm765, %v766, %v764
        %v768 = vrsqrt.pop %v733
        %v769 = vmul.f32 %v733, %v768
        %vm770 = vcmp.eq.f32.partialorder %v733, inf
        %v771 = vsel %vm770, %v733, %v769
        %vm772 = vcmp.eq.f32.partialorder %v733, 0.0
        %v773 = vand.u32 %v733, 2147483648
        %v774 = vsel %vm772, %v773, %v771
        %v775 = vrsqrt.pop %v734
        %v776 = vmul.f32 %v734, %v775
        %vm777 = vcmp.eq.f32.partialorder %v734, inf
        %v778 = vsel %vm777, %v734, %v776
        %vm779 = vcmp.eq.f32.partialorder %v734, 0.0
        %v780 = vand.u32 %v734, 2147483648
        %v781 = vsel %vm779, %v780, %v778
        %v782 = vrsqrt.pop %v735
        %v783 = vmul.f32 %v735, %v782
        %vm784 = vcmp.eq.f32.partialorder %v735, inf
        %v785 = vsel %vm784, %v735, %v783
        %vm786 = vcmp.eq.f32.partialorder %v735, 0.0
        %v787 = vand.u32 %v735, 2147483648
        %v788 = vsel %vm786, %v787, %v785
        %v789 = vrsqrt.pop %v736
        %v790 = vmul.f32 %v736, %v789
        %vm791 = vcmp.eq.f32.partialorder %v736, inf
        %v792 = vsel %vm791, %v736, %v790
        %vm793 = vcmp.eq.f32.partialorder %v736, 0.0
        %v794 = vand.u32 %v736, 2147483648
        %v795 = vsel %vm793, %v794, %v792
        %v796 = vrsqrt.pop %v737
        %v797 = vmul.f32 %v737, %v796
        %vm798 = vcmp.eq.f32.partialorder %v737, inf
        %v799 = vsel %vm798, %v737, %v797
        %vm800 = vcmp.eq.f32.partialorder %v737, 0.0
        %v801 = vand.u32 %v737, 2147483648
        %v802 = vsel %vm800, %v801, %v799
        %v803 = vrsqrt.pop %v738
        %v804 = vmul.f32 %v738, %v803
        %vm805 = vcmp.eq.f32.partialorder %v738, inf
        %v806 = vsel %vm805, %v738, %v804
        %vm807 = vcmp.eq.f32.partialorder %v738, 0.0
        %v808 = vand.u32 %v738, 2147483648
        %v809 = vsel %vm807, %v808, %v806
        %v810 = vrsqrt.pop %v739
        %v811 = vmul.f32 %v739, %v810
        %vm812 = vcmp.eq.f32.partialorder %v739, inf
        %v813 = vsel %vm812, %v739, %v811
        %vm814 = vcmp.eq.f32.partialorder %v739, 0.0
        %v815 = vand.u32 %v739, 2147483648
        %v816 = vsel %vm814, %v815, %v813
        %v817 = vrsqrt.pop %v740
        %v818 = vmul.f32 %v740, %v817
        %vm819 = vcmp.eq.f32.partialorder %v740, inf
        %v820 = vsel %vm819, %v740, %v818
        %vm821 = vcmp.eq.f32.partialorder %v740, 0.0
        %v822 = vand.u32 %v740, 2147483648
        %v823 = vsel %vm821, %v822, %v820
        %v824 = vrsqrt.pop %v741
        %v825 = vmul.f32 %v741, %v824
        %vm826 = vcmp.eq.f32.partialorder %v741, inf
        %v827 = vsel %vm826, %v741, %v825
        %vm828 = vcmp.eq.f32.partialorder %v741, 0.0
        %v829 = vand.u32 %v741, 2147483648
        %v830 = vsel %vm828, %v829, %v827
        %v831 = vrsqrt.pop %v742
        %v832 = vmul.f32 %v742, %v831
        %vm833 = vcmp.eq.f32.partialorder %v742, inf
        %v834 = vsel %vm833, %v742, %v832
        %vm835 = vcmp.eq.f32.partialorder %v742, 0.0
        %v836 = vand.u32 %v742, 2147483648
        %v837 = vsel %vm835, %v836, %v834
        %v838 = vrsqrt.pop %v743
        %v839 = vmul.f32 %v743, %v838
        %vm840 = vcmp.eq.f32.partialorder %v743, inf
        %v841 = vsel %vm840, %v743, %v839
        %vm842 = vcmp.eq.f32.partialorder %v743, 0.0
        %v843 = vand.u32 %v743, 2147483648
        %v844 = vsel %vm842, %v843, %v841
        %v845 = vrsqrt.pop %v744
        %v846 = vmul.f32 %v744, %v845
        %vm847 = vcmp.eq.f32.partialorder %v744, inf
        %v848 = vsel %vm847, %v744, %v846
        %vm849 = vcmp.eq.f32.partialorder %v744, 0.0
        %v850 = vand.u32 %v744, 2147483648
        %v851 = vsel %vm849, %v850, %v848
        %v852 = vrsqrt.pop %v745
        %v853 = vmul.f32 %v745, %v852
        %vm854 = vcmp.eq.f32.partialorder %v745, inf
        %v855 = vsel %vm854, %v745, %v853
        %vm856 = vcmp.eq.f32.partialorder %v745, 0.0
        %v857 = vand.u32 %v745, 2147483648
        %v858 = vsel %vm856, %v857, %v855
        %v859 = vrsqrt.pop %v746
        %v860 = vmul.f32 %v746, %v859
        %vm861 = vcmp.eq.f32.partialorder %v746, inf
        %v862 = vsel %vm861, %v746, %v860
        %vm863 = vcmp.eq.f32.partialorder %v746, 0.0
        %v864 = vand.u32 %v746, 2147483648
        %v865 = vsel %vm863, %v864, %v862
        %866 = vst [vmem:[%s193] sm:$0xff] %v753
        %867 = vst [vmem:[%s193 + $0x8] sm:$0xff] %v760
        %868 = vst [vmem:[%s193 + $0x10] sm:$0xff] %v767
        %869 = vst [vmem:[%s193 + $0x18] sm:$0xff] %v774
        %870 = vst [vmem:[%s193 + $0x20] sm:$0xff] %v781
        %871 = vst [vmem:[%s193 + $0x28] sm:$0xff] %v788
        %872 = vst [vmem:[%s193 + $0x30] sm:$0xff] %v795
        %873 = vst [vmem:[%s193 + $0x38] sm:$0xff] %v802
        %874 = vst [vmem:[%s193 + $0x40] sm:$0xff] %v809
        %875 = vst [vmem:[%s193 + $0x48] sm:$0xff] %v816
        %876 = vst [vmem:[%s193 + $0x50] sm:$0xff] %v823
        %877 = vst [vmem:[%s193 + $0x58] sm:$0xff] %v830
        %878 = vst [vmem:[%s193 + $0x60] sm:$0xff] %v837
        %879 = vst [vmem:[%s193 + $0x68] sm:$0xff] %v844
        %880 = vst [vmem:[%s193 + $0x70] sm:$0xff] %v851
        %881 = vst [vmem:[%s193 + $0x78] sm:$0xff] %v858
        %882 = vst [vmem:[%s193 + $0x80] sm:$0xff] %v865
        %s883 = sand.u32 %s91, 1
        %s884 = scalar_lea.sflag [#allocation4], %s883
        %s885 = sand.u32 %s91, 1
        %s886 = smul.addr %s885, 136
        %s887 = scalar_lea.vmem [#allocation7], %s886
        // Predicated region
        $region37: #{tpu_custom_call.1} parent=27 // pred_check
          %p888 = pneg %p101
        $region38: #{tpu_custom_call.1} parent=27 // pred_check_branch
          %890 = sbr.rel (%p888) target = $region40
        $region39: #{tpu_custom_call.1} parent=27 // pred_region
          %s892 = ssub.s32 2176, 2176
          %893 = vsyncadd %s884, %s892
          %s894 = smul.addr %s24, 17
          %s895 = sadd.s32 %s25, %s894
          %s896 = smul.addr %s895, 128
          %s897 = scalar_lea.hbm %s2, %s896
          %s898 = sshll.u32 %s887, 4
          %s899 = int_to_ptr.vmem [resolvable:$true] %s898
          %904 = dma.vmem_to_hbm [thread:$0]  %s899, 2176, %s897, %s884, 128, 128, 8
        $region40: #{tpu_custom_call.1} parent=27 // pred_fallthru
          _
      $region28: #{tpu_custom_call.1} parent=5 // pred_fallthru
        _
      %p905 = scmp.le.s32.totalorder 2, %s15
      // Predicated region
      $region41: #{tpu_custom_call.1} parent=5 // pred_check
        %p906 = pneg %p905
      $region42: #{tpu_custom_call.1} parent=5 // pred_check_branch
        %908 = sbr.rel (%p906) target = $region44
      $region43: #{tpu_custom_call.1} parent=5 // pred_region
        %s909 = ssub.s32 %s15, 2
        // Predicated region
        $region45: #{tpu_custom_call.1} parent=43 // pred_check
          %p910 = pneg %p107
        $region46: #{tpu_custom_call.1} parent=43 // pred_check_branch
          %912 = sbr.rel (%p910) target = $region48
        $region47: #{tpu_custom_call.1} parent=43 // pred_region
          %s913 = sand.u32 %s92, 1
          %s914 = scalar_lea.sflag [#allocation4], %s913
          %s915 = sand.u32 %s92, 1
          %s916 = smul.addr %s915, 136
          %s917 = scalar_lea.vmem [#allocation7], %s916
          %918 = dma.done %s914, 2176
        $region48: #{tpu_custom_call.1} parent=43 // pred_fallthru
          _
      $region44: #{tpu_custom_call.1} parent=5 // pred_fallthru
        _
    $region6: #{tpu_custom_call.1} parent=1 // loop_footer
      %s19 = sadd.s32 1, %s15
    $region7: #{tpu_custom_call.1} parent=1 // loop_footer_branch
      %14 = sbr.rel target = $region3
    $region8: #{tpu_custom_call.1} parent=1 // loop_exit
      _
    %919 = vsyncpa [#allocation3], 1
    %s920 = scalar_lea.sflag [#allocation3], 1
    %921 = vsyncpa %s920, 1
    %922 = vsyncpa [#allocation6], 1
    %s923 = scalar_lea.sflag [#allocation6], 1
    %924 = vsyncpa %s923, 1
    %925 = vsyncpa [#allocation4], 1
    %s926 = scalar_lea.sflag [#allocation4], 1
    %927 = vsyncpa %s926, 1

</llo_original>
